<compile_context>
chip_gen: v7x
topology: tpu7x:2x2x1
jax: 0.10.0
libtpu: 0.0.40
codegen_flags: <defaults>
</compile_context>

<pallas_src>
import functools

import jax
import jax.numpy as jnp
from jax.experimental import pallas as pl
from jax.experimental.pallas import tpu as pltpu

H_PAD = 128   # padded hidden width (ones-path lives at lane index `hidden_size`)
C_PAD = 128   # lane-dense padded output width


def _mlp_kernel(x_ref, w1_ref, w2_ref, o_ref):
    # hidden (incl. folded b1 and the ones path) = relu(x_aug @ W1_full)
    h = jnp.dot(x_ref[...], w1_ref[...], preferred_element_type=jnp.float32)
    h = jnp.maximum(h, 0.0).astype(x_ref.dtype)          # back to bf16 for MXU
    # logits (C_PAD lanes, b2 folded in) = h @ W2_full
    o_ref[...] = jnp.dot(h, w2_ref[...], preferred_element_type=jnp.float32)


def pack_params(w1, b1, w2, b2, *, h_pad=H_PAD, c_pad=C_PAD):
    """Fold biases into padded weight matrices (done once, off the hot path).

    x is augmented with a trailing ones column.  W1_full[(F), :H] = b1 and
    W1_full[F, H] = 1.0 so hidden column H is exactly 1.0 after relu; W2_full
    row H holds b2.  All other padding is zero, so padded hidden/output lanes
    contribute nothing.
    """
    f, h = w1.shape
    c = w2.shape[1]
    assert h + 1 <= h_pad and c <= c_pad
    w1_full = jnp.zeros((f + 1, h_pad), jnp.float32)
    w1_full = w1_full.at[:f, :h].set(w1)
    w1_full = w1_full.at[f, :h].set(b1)           # folded hidden bias
    w1_full = w1_full.at[f, h].set(1.0)           # ones path (survives relu)
    w2_full = jnp.zeros((h_pad, c_pad), jnp.float32)
    w2_full = w2_full.at[:h, :c].set(w2)
    w2_full = w2_full.at[h, :c].set(b2)           # folded output bias
    return w1_full.astype(jnp.bfloat16), w2_full.astype(jnp.bfloat16)


def _cost(n, f_aug, h_pad, c_pad, in_bytes, out_bytes):
    return pl.CostEstimate(
        flops=2 * n * (f_aug * h_pad + h_pad * c_pad),
        transcendentals=0,
        bytes_accessed=in_bytes + out_bytes,
    )


@functools.partial(jax.jit, static_argnames=("out_size", "block_n"))
def classificavinho_forward(x, w1_full, w2_full, out_size, *, block_n=256):
    """x: (N, F) f32; packed weights from pack_params -> (N, out_size) f32 logits."""
    n, f = x.shape
    f_aug = f + 1
    h_pad, c_pad = w2_full.shape

    # Augment with the ones column (bias path) and cast to bf16 for the MXU.
    x_aug = jnp.concatenate([x, jnp.ones((n, 1), jnp.float32)], axis=1)
    x_aug = x_aug.astype(jnp.bfloat16)

    in_bytes = 2 * (x_aug.size + w1_full.size + w2_full.size)

    if n <= block_n:
        # Tiny batch: gridless call — whole operands as single VMEM blocks,
        # no grid-step bookkeeping, no pointless double-buffering.
        out = pl.pallas_call(
            _mlp_kernel,
            out_shape=jax.ShapeDtypeStruct((n, c_pad), jnp.float32),
            in_specs=[pl.BlockSpec(memory_space=pltpu.MemorySpace.VMEM)] * 3,
            out_specs=pl.BlockSpec(memory_space=pltpu.MemorySpace.VMEM),
            cost_estimate=_cost(n, f_aug, h_pad, c_pad, in_bytes, n * c_pad * 4),
        )(x_aug, w1_full, w2_full)
        return out[:, :out_size]

    # Large batch: tile N with a parallel grid axis (both v7x TensorCores);
    # weights stay whole-array resident, rows stream through.
    n_pad = pl.cdiv(n, block_n) * block_n
    if n_pad != n:
        x_aug = jnp.pad(x_aug, ((0, n_pad - n), (0, 0)))
    out = pl.pallas_call(
        _mlp_kernel,
        out_shape=jax.ShapeDtypeStruct((n_pad, c_pad), jnp.float32),
        grid=(n_pad // block_n,),
        in_specs=[
            pl.BlockSpec((block_n, f_aug), lambda i: (i, 0)),
            pl.BlockSpec((f_aug, h_pad), lambda i: (0, 0)),
            pl.BlockSpec((h_pad, c_pad), lambda i: (0, 0)),
        ],
        out_specs=pl.BlockSpec((block_n, c_pad), lambda i: (i, 0)),
        compiler_params=pltpu.CompilerParams(dimension_semantics=("parallel",)),
        cost_estimate=_cost(n_pad, f_aug, h_pad, c_pad, in_bytes, n_pad * c_pad * 4),
    )(x_aug, w1_full, w2_full)
    return out[:n, :out_size]


def init_params(key, input_size, hidden_size, out_size):
    """Deterministic init mimicking nn.Linear default (U(-1/sqrt(fan_in), +))."""
    k1, k2, k3, k4 = jax.random.split(key, 4)
    lim1 = 1.0 / jnp.sqrt(jnp.float32(input_size))
    lim2 = 1.0 / jnp.sqrt(jnp.float32(hidden_size))
    # Stored already transposed relative to PyTorch: (in, out)
    w1 = jax.random.uniform(k1, (input_size, hidden_size), jnp.float32, -lim1, lim1)
    b1 = jax.random.uniform(k2, (hidden_size,), jnp.float32, -lim1, lim1)
    w2 = jax.random.uniform(k3, (hidden_size, out_size), jnp.float32, -lim2, lim2)
    b2 = jax.random.uniform(k4, (out_size,), jnp.float32, -lim2, lim2)
    return w1, b1, w2, b2


if __name__ == "__main__":
    # Wine dataset: 13 features, 3 classes; hidden_size = 32 (as in the module).
    input_size, hidden_size, out_size = 13, 32, 3

    key = jax.random.PRNGKey(0)
    kx, kp, kb = jax.random.split(key, 3)
    w1, b1, w2, b2 = init_params(kp, input_size, hidden_size, out_size)
    w1_full, w2_full = pack_params(w1, b1, w2, b2)

    # --- small batch: gridless path ---
    batch = 8
    x = jax.random.normal(kx, (batch, input_size), jnp.float32)
    out = classificavinho_forward(x, w1_full, w2_full, out_size)
    jax.block_until_ready(out)
    ref = jnp.maximum(x @ w1 + b1, 0.0) @ w2 + b2
    assert out.shape == (batch, out_size)
    assert jnp.allclose(out, ref, atol=5e-2, rtol=5e-2)  # bf16 MXU inputs, f32 acc

    # --- larger batch: tiled parallel-N path ---
    big = 512
    xb = jax.random.normal(kb, (big, input_size), jnp.float32)
    outb = classificavinho_forward(xb, w1_full, w2_full, out_size)
    jax.block_until_ready(outb)
    refb = jnp.maximum(xb @ w1 + b1, 0.0) @ w2 + b2
    assert outb.shape == (big, out_size)
    assert jnp.allclose(outb, refb, atol=5e-2, rtol=5e-2)

    print("KERNEL_OK")
</pallas_src>

<mosaic_0001>
module attributes {stable_mosaic.version = 11 : i64} {
  func.func @_mlp_kernel(%arg0: memref<8x14xbf16, #tpu.memory_space<vmem>>, %arg1: memref<14x128xbf16, #tpu.memory_space<vmem>>, %arg2: memref<128x128xbf16, #tpu.memory_space<vmem>>, %arg3: memref<8x128xf32, #tpu.memory_space<vmem>>) attributes {dimension_semantics = [], scalar_prefetch = 0 : i64, scratch_operands = 0 : i64, tpu.core_type = #tpu.core_type<tc>} {
    %c0 = arith.constant 0 : index
    %c0_0 = arith.constant 0 : index
    %0 = vector.load %arg0[%c0, %c0_0] : memref<8x14xbf16, #tpu.memory_space<vmem>>, vector<8x14xbf16>
    %c0_1 = arith.constant 0 : index
    %c0_2 = arith.constant 0 : index
    %1 = vector.load %arg1[%c0_1, %c0_2] : memref<14x128xbf16, #tpu.memory_space<vmem>>, vector<14x128xbf16>
    %cst = arith.constant dense<0.000000e+00> : vector<8x128xf32>
    %2 = tpu.matmul %0, %1, %cst {dimension_numbers = #tpu.dot_dimension_numbers<[1], [0], [0], [1], [0, 0, 1, 1], [], []>} : vector<8x14xbf16>, vector<14x128xbf16>, vector<8x128xf32> -> vector<8x128xf32>
    %cst_3 = arith.constant 0.000000e+00 : f32
    %3 = vector.broadcast %cst_3 : f32 to vector<8x128xf32>
    %4 = arith.maximumf %2, %3 : vector<8x128xf32>
    %5 = arith.truncf %4 : vector<8x128xf32> to vector<8x128xbf16>
    %c0_4 = arith.constant 0 : index
    %c0_5 = arith.constant 0 : index
    %6 = vector.load %arg2[%c0_4, %c0_5] : memref<128x128xbf16, #tpu.memory_space<vmem>>, vector<128x128xbf16>
    %cst_6 = arith.constant dense<0.000000e+00> : vector<8x128xf32>
    %7 = tpu.matmul %5, %6, %cst_6 {dimension_numbers = #tpu.dot_dimension_numbers<[1], [0], [0], [1], [0, 0, 1, 1], [], []>} : vector<8x128xbf16>, vector<128x128xbf16>, vector<8x128xf32> -> vector<8x128xf32>
    %c0_7 = arith.constant 0 : index
    %c0_8 = arith.constant 0 : index
    %8 = vector.load %arg3[%c0_7, %c0_8] : memref<8x128xf32, #tpu.memory_space<vmem>>, vector<8x128xf32>
    tpu.vector_store %arg3[%c0_7, %c0_8], %7 {strides = array<i32>} : memref<8x128xf32, #tpu.memory_space<vmem>>, vector<8x128xf32>,
    return
  }
}

</mosaic_0001>

<llo_original>
// kernel: classificavinho_forward.1
$region0: #{classificavinho_forward.1}
  #allocation0 [shape = 'u32[]', space=smem, size = 0x4, offset = 0x4, fixed_abs, tag = 'smem constant byte address 0x4 - core index']
  #allocation1 [shape = 'u32[144,128]{1,0:T(1,128)}', space=vmem, size = 0x12000, scoped, tag = 'internal scratch']
  %s0 = inlined_call_operand.vmem [shape: bf16[8,14], index: 0, kind: input, shape index: {}]
  %s1 = inlined_call_operand.vmem [shape: bf16[14,128], index: 1, kind: input, shape index: {}]
  %s2 = inlined_call_operand.hbm [shape: bf16[128,128], index: 2, kind: input, shape index: {}]
  %s3 = inlined_call_operand.vmem [shape: f32[8,128], index: 3, kind: output, shape index: {}]
  %s4 = sld [smem:[#allocation0]]
  $region26: #{classificavinho_forward.1} parent=0
    _
  %s6 = ssub.s32 1, %s4
  %s7 = scalar_select 0, %s6, %s4
  $region1: #{classificavinho_forward.1} parent=0
    #allocation2 [shape = 'u8[32768]{0}', space=vmem, size = 0x8000, scoped, tag = 'input window, operand 2, single buffered']
    #allocation3 [shape = 's32[1]{0}', space=sflag, size = 0x4, scoped, tag = 'scoped memory for classificavinho_forward.1']
    %8 = vsyncpa [#allocation3], 0
    // Predicated region
    $region2: #{classificavinho_forward.1} parent=1 // pred_check
      _
    $region3: #{classificavinho_forward.1} parent=1 // pred_check_branch
      %10 = sbr.rel (0) target = $region5
    $region4: #{classificavinho_forward.1} parent=1 // pred_region
      _
    $region5: #{classificavinho_forward.1} parent=1 // pred_fallthru
      _
    // Predicated region
    $region6: #{classificavinho_forward.1} parent=1 // pred_check
      _
    $region7: #{classificavinho_forward.1} parent=1 // pred_check_branch
      %12 = sbr.rel (0) target = $region9
    $region8: #{classificavinho_forward.1} parent=1 // pred_region
      _
    $region9: #{classificavinho_forward.1} parent=1 // pred_fallthru
      _
    // Predicated region
    $region10: #{classificavinho_forward.1} parent=1 // pred_check
      _
    $region11: #{classificavinho_forward.1} parent=1 // pred_check_branch
      %14 = sbr.rel (0) target = $region13
    $region12: #{classificavinho_forward.1} parent=1 // pred_region
      %s16 = ssub.s32 1024, 1024
      %17 = vsyncadd [#allocation3], %s16
      %s18 = sshll.u32 [#allocation2], 4
      %s19 = int_to_ptr.vmem [resolvable:$true] %s18
      %24 = dma.hbm_to_vmem [thread:$0]  %s2, 1024, %s19, [#allocation3], 64, 64, 4
    $region13: #{classificavinho_forward.1} parent=1 // pred_fallthru
      _
    // Predicated region
    $region14: #{classificavinho_forward.1} parent=1 // pred_check
      _
    $region15: #{classificavinho_forward.1} parent=1 // pred_check_branch
      %26 = sbr.rel (0) target = $region17
    $region16: #{classificavinho_forward.1} parent=1 // pred_region
      %27 = dma.done [#allocation3], 1024
    $region17: #{classificavinho_forward.1} parent=1 // pred_fallthru
      _
    %v29 = vld [vmem:[%s0] sm:$0xf]
    %v30 = vld [vmem:[%s1] sm:$0xf]
    %v31 = vld [vmem:[%s1 + $0x4] sm:$0x7]
    %v34 = vunpack.c.l.b16 %v30
    %v35 = vunpack.c.l.b16 %v31
    %v36 = vpack.c.b16 %v35, %v34
    %vm37 = vcmask 113664
    %v39 = vsel %vm37, %v29, 0
    %vm41 = vcmask 1046528
    %v43 = vsel %vm41, %v36, 0
    %45 = vmatprep.subr.bf16.mxu0 0
    %46 = vmatpush1.bf16.msra.mxu0 %v43
    %47 = vmatprep.subr.bf16.mxu0 0
    %48 = vmatpush1.bf16.msra.mxu0 0
    %49 = vmatprep.subr.bf16.mxu0 0
    %50 = vmatpush1.bf16.msra.mxu0 0
    %51 = vmatprep.subr.bf16.mxu0 0
    %52 = vmatpush1.bf16.msra.mxu0 0
    %53 = vmatprep.subr.bf16.mxu0 0
    %54 = vmatpush1.bf16.msra.mxu0 0
    %55 = vmatprep.subr.bf16.mxu0 0
    %56 = vmatpush1.bf16.msra.mxu0 0
    %57 = vmatprep.subr.bf16.mxu0 0
    %58 = vmatpush1.bf16.msra.mxu0 0
    %59 = vmatprep.subr.bf16.mxu0 0
    %60 = vmatpush1.bf16.msra.mxu0 0
    %61 = vmatprep.subr.bf16.mxu0 0
    %62 = vmatpush1.bf16.msra.mxu0 0
    %63 = vmatprep.subr.bf16.mxu0 0
    %64 = vmatpush1.bf16.msra.mxu0 0
    %65 = vmatprep.subr.bf16.mxu0 0
    %66 = vmatpush1.bf16.msra.mxu0 0
    %67 = vmatprep.subr.bf16.mxu0 0
    %68 = vmatpush1.bf16.msra.mxu0 0
    %69 = vmatprep.subr.bf16.mxu0 0
    %70 = vmatpush1.bf16.msra.mxu0 0
    %71 = vmatprep.subr.bf16.mxu0 0
    %72 = vmatpush1.bf16.msra.mxu0 0
    %73 = vmatprep.subr.bf16.mxu0 0
    %74 = vmatpush1.bf16.msra.mxu0 0
    %75 = vmatprep.subr.bf16.mxu0 0
    %76 = vmatpush1.bf16.msra.mxu0 0
    %77 = vmatprep.mubr.bf16.mxu0 0
    %78 = vmatmul.mubr.bf16.gmra.mrb[0].mxu0 %v39
    %v79 = vpop.f32.mrb[0].mxu0
    %v80 = vadd.f32 0.0, %v79
    %v81 = vpop.f32.mrb[0].mxu0
    %v82 = vpop.f32.mrb[0].mxu0
    %v83 = vpop.f32.mrb[0].mxu0
    %84 = vdwg.mxu0
    %v85 = vmax.f32 %v80, 0.0
    %v86 = vpack.c.bf16 %v85, %v85
    %v87 = vld [vmem:[#allocation2] sm:$0xf]
    %v88 = vld [vmem:[#allocation2 + $0x4] sm:$0xf]
    %v89 = vld [vmem:[#allocation2 + $0x8] sm:$0xf]
    %v90 = vld [vmem:[#allocation2 + $0xc] sm:$0xf]
    %v91 = vld [vmem:[#allocation2 + $0x10] sm:$0xf]
    %v92 = vld [vmem:[#allocation2 + $0x14] sm:$0xf]
    %v93 = vld [vmem:[#allocation2 + $0x18] sm:$0xf]
    %v94 = vld [vmem:[#allocation2 + $0x1c] sm:$0xf]
    %v95 = vld [vmem:[#allocation2 + $0x20] sm:$0xf]
    %v96 = vld [vmem:[#allocation2 + $0x24] sm:$0xf]
    %v97 = vld [vmem:[#allocation2 + $0x28] sm:$0xf]
    %v98 = vld [vmem:[#allocation2 + $0x2c] sm:$0xf]
    %v99 = vld [vmem:[#allocation2 + $0x30] sm:$0xf]
    %v100 = vld [vmem:[#allocation2 + $0x34] sm:$0xf]
    %v101 = vld [vmem:[#allocation2 + $0x38] sm:$0xf]
    %v102 = vld [vmem:[#allocation2 + $0x3c] sm:$0xf]
    %v119 = vunpack.c.l.b16 %v87
    %v120 = vunpack.c.l.b16 %v88
    %v121 = vunpack.c.l.b16 %v89
    %v122 = vunpack.c.l.b16 %v90
    %v123 = vunpack.c.l.b16 %v91
    %v124 = vunpack.c.l.b16 %v92
    %v125 = vunpack.c.l.b16 %v93
    %v126 = vunpack.c.l.b16 %v94
    %v127 = vunpack.c.l.b16 %v95
    %v128 = vunpack.c.l.b16 %v96
    %v129 = vunpack.c.l.b16 %v97
    %v130 = vunpack.c.l.b16 %v98
    %v131 = vunpack.c.l.b16 %v99
    %v132 = vunpack.c.l.b16 %v100
    %v133 = vunpack.c.l.b16 %v101
    %v134 = vunpack.c.l.b16 %v102
    %v135 = vpack.c.b16 %v120, %v119
    %v136 = vpack.c.b16 %v122, %v121
    %v137 = vpack.c.b16 %v124, %v123
    %v138 = vpack.c.b16 %v126, %v125
    %v139 = vpack.c.b16 %v128, %v127
    %v140 = vpack.c.b16 %v130, %v129
    %v141 = vpack.c.b16 %v132, %v131
    %v142 = vpack.c.b16 %v134, %v133
    %151 = vmatprep.subr.bf16.mxu0 0
    %152 = vmatpush1.bf16.msra.mxu0 %v135
    %153 = vmatprep.subr.bf16.mxu0 0
    %154 = vmatpush1.bf16.msra.mxu0 %v136
    %155 = vmatprep.subr.bf16.mxu0 0
    %156 = vmatpush1.bf16.msra.mxu0 %v137
    %157 = vmatprep.subr.bf16.mxu0 0
    %158 = vmatpush1.bf16.msra.mxu0 %v138
    %159 = vmatprep.subr.bf16.mxu0 0
    %160 = vmatpush1.bf16.msra.mxu0 %v139
    %161 = vmatprep.subr.bf16.mxu0 0
    %162 = vmatpush1.bf16.msra.mxu0 %v140
    %163 = vmatprep.subr.bf16.mxu0 0
    %164 = vmatpush1.bf16.msra.mxu0 %v141
    %165 = vmatprep.subr.bf16.mxu0 0
    %166 = vmatpush1.bf16.msra.mxu0 %v142
    %167 = vmatprep.subr.bf16.mxu0 0
    %168 = vmatpush1.bf16.msra.mxu0 0
    %169 = vmatprep.subr.bf16.mxu0 0
    %170 = vmatpush1.bf16.msra.mxu0 0
    %171 = vmatprep.subr.bf16.mxu0 0
    %172 = vmatpush1.bf16.msra.mxu0 0
    %173 = vmatprep.subr.bf16.mxu0 0
    %174 = vmatpush1.bf16.msra.mxu0 0
    %175 = vmatprep.subr.bf16.mxu0 0
    %176 = vmatpush1.bf16.msra.mxu0 0
    %177 = vmatprep.subr.bf16.mxu0 0
    %178 = vmatpush1.bf16.msra.mxu0 0
    %179 = vmatprep.subr.bf16.mxu0 0
    %180 = vmatpush1.bf16.msra.mxu0 0
    %181 = vmatprep.subr.bf16.mxu0 0
    %182 = vmatpush1.bf16.msra.mxu0 0
    %183 = vmatprep.mubr.bf16.mxu0 0
    %184 = vmatmul.mubr.bf16.gmra.mrb[0].mxu0 %v86
    %v185 = vpop.f32.mrb[0].mxu0
    %v186 = vadd.f32 0.0, %v185
    %v187 = vpop.f32.mrb[0].mxu0
    %v188 = vpop.f32.mrb[0].mxu0
    %v189 = vpop.f32.mrb[0].mxu0
    %190 = vdwg.mxu0
    %191 = vst [vmem:[%s3] sm:$0xff] %v186
    // Predicated region
    $region18: #{classificavinho_forward.1} parent=1 // pred_check
      _
    $region19: #{classificavinho_forward.1} parent=1 // pred_check_branch
      %193 = sbr.rel (0) target = $region21
    $region20: #{classificavinho_forward.1} parent=1 // pred_region
      _
    $region21: #{classificavinho_forward.1} parent=1 // pred_fallthru
      _
    // Predicated region
    $region22: #{classificavinho_forward.1} parent=1 // pred_check
      _
    $region23: #{classificavinho_forward.1} parent=1 // pred_check_branch
      %195 = sbr.rel (0) target = $region25
    $region24: #{classificavinho_forward.1} parent=1 // pred_region
      _
    $region25: #{classificavinho_forward.1} parent=1 // pred_fallthru
      _
    %196 = vsyncpa [#allocation3], 1

</llo_original>
